<compile_context>
chip_gen: v5e
topology: v5e:2x2
jax: 0.10.0
libtpu: 0.0.40
codegen_flags: <defaults>
</compile_context>

<pallas_src>
import numpy as np
import jax
import jax.numpy as jnp
from jax.experimental import pallas as pl
from jax.experimental.pallas import tpu as pltpu

# Sublane layout of the packed per-node (8, HP) tile.
ROW_H, ROW_C, ROW_WFX, ROW_I, ROW_O, ROW_U = 0, 1, 2, 3, 4, 5


def graph_lstm_kernel(pred_ref, deg_ref, lbl_ref,   # SMEM graph tables (1-D)
                      init_ref,                     # ANY/HBM packed init state
                      uf_ref, uiou_ref,             # VMEM recurrent weights
                      state_ref,                    # VMEM output: packed state
                      init_sem):                    # DMA semaphore scratch
    NP1, _, HP = state_ref.shape
    N = NP1 - 1
    D = pred_ref.shape[0] // N

    # One HBM->VMEM DMA straight into the output window (state is never
    # double-resident in VMEM).
    cp = pltpu.make_async_copy(init_ref, state_ref, init_sem)
    cp.start()
    cp.wait()

    # Loop-invariant weights, loaded once.
    u_f = uf_ref[...]       # (HP, 2HP)  = [U_f_t | U_f_b - U_f_t]
    u_iou = uiou_ref[...]   # (2HP, 3HP) = [U_iou_t ; U_iou_b - U_iou_t]
    row_ids = jax.lax.broadcasted_iota(jnp.int32, (8, HP), 0)

    # TODO(synk): frontier-batch nodes (PrefetchScalarGridSpec over topo levels,
    # (E,HP)/(F,2HP) tiles) to raise the MXU M dimension beyond 1 on wide DAGs;
    # the serial walk below is the exact equivalent of dgl.prop_nodes_topo.
    @pl.loop(0, N)
    def _(n):
        self_blk = state_ref[n]                       # (8, HP) own packed tile
        wfx = self_blk[ROW_WFX:ROW_WFX + 1, :]        # W_f x_n + b_f

        h_sum = jnp.zeros((1, HP), jnp.float32)
        h1_sum = jnp.zeros((1, HP), jnp.float32)
        c_sum = jnp.zeros((1, HP), jnp.float32)

        # message_func + reduce_func over predecessors.  Padded edge slots point
        # at the all-zero sentinel row N with label 0 -> no masking needed.
        # (Static unroll; switch to lax.fori_loop / frontier batching if D grows.)
        for j in range(D):
            idx = pred_ref[n * D + j]
            lab = lbl_ref[n * D + j]                  # f32 scalar (0.0 / 1.0)
            src = state_ref[idx]                      # (8, HP): one vld
            h_src = src[ROW_H:ROW_H + 1, :]
            c_src = src[ROW_C:ROW_C + 1, :]
            h_sum = h_sum + h_src
            h1_sum = h1_sum + lab * h_src
            # [h_t0 | h_t1] @ U_f == h_src@U_f_t + lab * h_src@(U_f_b - U_f_t)
            r = jnp.dot(h_src, u_f, preferred_element_type=jnp.float32)
            f = jax.nn.sigmoid(wfx + r[:, :HP] + lab * r[:, HP:])
            c_sum = c_sum + f * c_src                 # sentinel edges add 0

        # sum_d [h_t0 | h_t1] @ U_iou == [sum h | sum lab*h] @ [U_t ; U_b - U_t]
        h_pair = jnp.concatenate([h_sum, h1_sum], axis=1)           # (1, 2HP)
        iou_mid = jnp.dot(h_pair, u_iou, preferred_element_type=jnp.float32)

        c_prev = self_blk[ROW_C:ROW_C + 1, :]
        c_in = jnp.where(deg_ref[n] > 0, c_sum, c_prev)  # deg==0: reduce never ran

        # apply_node_func (b_iou already folded into the ROW_I/O/U sublanes)
        i_g = jax.nn.sigmoid(self_blk[ROW_I:ROW_I + 1, :] + iou_mid[:, 0:HP])
        o_g = jax.nn.sigmoid(self_blk[ROW_O:ROW_O + 1, :] + iou_mid[:, HP:2 * HP])
        u_g = jnp.tanh(self_blk[ROW_U:ROW_U + 1, :] + iou_mid[:, 2 * HP:3 * HP])

        c_new = i_g * u_g + c_in
        h_new = o_g * jnp.tanh(c_new)

        # Full (8, HP) read-modify-write: one unmasked vst per node.
        new_blk = jnp.where(row_ids == ROW_H, h_new,
                            jnp.where(row_ids == ROW_C, c_new, self_blk))
        state_ref[n] = new_blk


def _round_up(v, m):
    return ((v + m - 1) // m) * m


@jax.jit
def single_round_graph_lstm(pred_idx, deg, edge_label, x, h0, c0, params):
    """params store weights transposed (in, out): y = x @ W  (== torch Linear)."""
    N, H = h0.shape
    D = pred_idx.shape[1]
    HP = _round_up(H, 128)
    f32 = jnp.float32

    x = x.astype(f32)
    h0 = h0.astype(f32)
    c0 = c0.astype(f32)

    # Hoisted node-level input projections (single M=N matmuls), biases folded in.
    iou_x = x @ params["w_iou"] + params["b_iou"]           # (N, 3H)
    wfx = x @ params["w_f"] + params["b_f"]                 # (N, H)

    # Packed per-node state: one (8, HP) tile / node + an all-zero sentinel row N.
    def padH(a):
        return jnp.pad(a, ((0, 0), (0, HP - a.shape[1])))
    zeros = jnp.zeros((N, HP), f32)
    packed = jnp.stack(
        [padH(h0), padH(c0), padH(wfx),
         padH(iou_x[:, 0:H]), padH(iou_x[:, H:2 * H]), padH(iou_x[:, 2 * H:3 * H]),
         zeros, zeros], axis=1)                              # (N, 8, HP)
    packed = jnp.concatenate([packed, jnp.zeros((1, 8, HP), f32)], axis=0)

    # Graph tables: padded predecessor slots point at the sentinel with label 0.
    valid = jnp.arange(D, dtype=jnp.int32)[None, :] < deg.astype(jnp.int32)[:, None]
    pred_flat = jnp.where(valid, pred_idx.astype(jnp.int32), N).reshape(-1)
    lbl_flat = jnp.where(valid, edge_label.astype(f32), 0.0).reshape(-1)
    deg_i = deg.astype(jnp.int32)

    # Recurrent weights, padded & pre-combined:
    #   U_f_cat   (HP, 2HP)  = [U_f_t | U_f_b - U_f_t]
    #   U_iou_cat (2HP, 3HP) = [U_iou_t ; U_iou_b - U_iou_t], gate blocks padded
    #   to HP lanes so the i/o/u slices stay 128-aligned.  Zero padding is exact.
    u_f = params["u_f"].astype(f32)       # (2H, H)
    u_iou = params["u_iou"].astype(f32)   # (2H, 3H)
    uf_t, uf_b = u_f[:H], u_f[H:]
    uf_cat = jnp.zeros((HP, 2 * HP), f32)
    uf_cat = uf_cat.at[:H, :H].set(uf_t).at[:H, HP:HP + H].set(uf_b - uf_t)

    def pad_gates(a):  # (H, 3H) -> (HP, 3HP), each gate block padded to HP lanes
        out = jnp.zeros((HP, 3 * HP), f32)
        for g in range(3):
            out = out.at[:H, g * HP:g * HP + H].set(a[:, g * H:(g + 1) * H])
        return out

    uiou_t, uiou_b = u_iou[:H], u_iou[H:]
    uiou_cat = jnp.concatenate([pad_gates(uiou_t), pad_gates(uiou_b - uiou_t)],
                               axis=0)                       # (2HP, 3HP)

    smem = pl.BlockSpec(memory_space=pltpu.MemorySpace.SMEM)
    vmem = pl.BlockSpec(memory_space=pltpu.MemorySpace.VMEM)
    hbm = pl.BlockSpec(memory_space=pl.ANY)

    state_bytes = (N + 1) * 8 * HP * 4
    weight_bytes = (uf_cat.size + uiou_cat.size) * 4
    vmem_limit = int(min(max(2 * (state_bytes + weight_bytes) + (4 << 20), 32 << 20),
                         64 << 20))

    state_out = pl.pallas_call(
        graph_lstm_kernel,
        out_shape=jax.ShapeDtypeStruct((N + 1, 8, HP), f32),
        in_specs=[smem, smem, smem, hbm, vmem, vmem],
        out_specs=vmem,
        scratch_shapes=[pltpu.SemaphoreType.DMA],
        compiler_params=pltpu.CompilerParams(vmem_limit_bytes=vmem_limit),
    )(pred_flat, deg_i, lbl_flat, packed, uf_cat, uiou_cat)

    return state_out[:N, ROW_H, :H], state_out[:N, ROW_C, :H]


def _sigmoid(z):
    return 1.0 / (1.0 + np.exp(-z))


def reference_numpy(pred_idx, deg, edge_label, x, h0, c0, p):
    """Pure numpy re-implementation of the DGL propagation for verification."""
    N, H = h0.shape
    iou_x = x @ p["w_iou"]
    wf_x = x @ p["w_f"]
    h = np.array(h0, dtype=np.float32).copy()
    c = np.array(c0, dtype=np.float32).copy()
    for n in range(N):
        d = int(deg[n])
        if d > 0:
            idxs = pred_idx[n, :d]
            lab = edge_label[n, :d].astype(np.float32)[:, None]
            h_src = h[idxs]
            c_src = c[idxs]
            h_two = np.concatenate([(1.0 - lab) * h_src, lab * h_src], axis=1)
            iou_mid = (h_two @ p["u_iou"]).sum(0)
            f_mid = h_two @ p["u_f"]
            f = _sigmoid(wf_x[n][None, :] + f_mid + p["b_f"])
            c_in = (f * c_src).sum(0)
        else:
            iou_mid = np.zeros(3 * H, np.float32)
            c_in = c[n]
        iou = iou_x[n] + iou_mid + p["b_iou"][0]
        i_g, o_g, u_g = np.split(iou, 3)
        i_g, o_g, u_g = _sigmoid(i_g), _sigmoid(o_g), np.tanh(u_g)
        c[n] = i_g * u_g + c_in
        h[n] = o_g * np.tanh(c[n])
    return h, c


if __name__ == "__main__":
    x_size, h_size = 16, 32
    N, D_max = 8, 2

    key = jax.random.PRNGKey(0)
    k = jax.random.split(key, 8)

    def linear_w(kk, fan_in, fan_out):
        bound = 1.0 / np.sqrt(fan_in)
        return jax.random.uniform(kk, (fan_in, fan_out), jnp.float32, -bound, bound)

    params = {
        "w_iou": linear_w(k[0], x_size, 3 * h_size),
        "w_f":   linear_w(k[1], x_size, h_size),
        "u_iou": linear_w(k[2], 2 * h_size, 3 * h_size),
        "u_f":   linear_w(k[3], 2 * h_size, h_size),
        "b_iou": jnp.zeros((1, 3 * h_size), jnp.float32),
        "b_f":   jnp.zeros((1, h_size), jnp.float32),
    }

    # Small DAG in topological order: 0-3 leaves, 4<-{0,1}, 5<-{2,3}, 6<-{4,5}, 7<-{6}.
    pred_idx = jnp.array([[0, 0], [0, 0], [0, 0], [0, 0],
                          [0, 1], [2, 3], [4, 5], [6, 0]], jnp.int32)
    deg = jnp.array([0, 0, 0, 0, 2, 2, 2, 1], jnp.int32)
    edge_label = jnp.array([[0, 0], [0, 0], [0, 0], [0, 0],
                            [0, 1], [1, 0], [0, 1], [1, 0]], jnp.int32)

    x = jax.random.normal(k[4], (N, x_size), jnp.float32)
    h0 = jax.random.normal(k[5], (N, h_size), jnp.float32) * 0.1
    c0 = jax.random.normal(k[6], (N, h_size), jnp.float32) * 0.1

    h_out, c_out = single_round_graph_lstm(pred_idx, deg, edge_label, x, h0, c0, params)
    jax.block_until_ready((h_out, c_out))

    # Verify against a pure-numpy reference of the DGL semantics.
    # (Default-precision MXU matmuls -> tolerance relaxed vs. the f32 reference.)
    p_np = {kk: np.asarray(vv, np.float32) for kk, vv in params.items()}
    h_ref, c_ref = reference_numpy(np.asarray(pred_idx), np.asarray(deg),
                                   np.asarray(edge_label), np.asarray(x),
                                   np.asarray(h0), np.asarray(c0), p_np)
    np.testing.assert_allclose(np.asarray(h_out), h_ref, rtol=2e-2, atol=2e-2)
    np.testing.assert_allclose(np.asarray(c_out), c_ref, rtol=2e-2, atol=2e-2)

    print("KERNEL_OK")
</pallas_src>

<mosaic_0001>
module attributes {stable_mosaic.version = 11 : i64} {
  func.func @graph_lstm_kernel(%arg0: memref<16xi32, #tpu.memory_space<smem>>, %arg1: memref<8xi32, #tpu.memory_space<smem>>, %arg2: memref<16xf32, #tpu.memory_space<smem>>, %arg3: memref<9x8x128xf32, #tpu.memory_space<any>>, %arg4: memref<128x256xf32, #tpu.memory_space<vmem>>, %arg5: memref<256x384xf32, #tpu.memory_space<vmem>>, %arg6: memref<9x8x128xf32, #tpu.memory_space<vmem>>, %arg7: memref<!tpu.dma_semaphore, #tpu.memory_space<semaphore_mem>>) attributes {dimension_semantics = [], scalar_prefetch = 0 : i64, scratch_operands = 1 : i64, tpu.core_type = #tpu.core_type<tc>} {
    tpu.enqueue_dma source(%arg3 : memref<9x8x128xf32, #tpu.memory_space<any>>) target(%arg6 : memref<9x8x128xf32, #tpu.memory_space<vmem>>) target_semaphore(%arg7 : memref<!tpu.dma_semaphore, #tpu.memory_space<semaphore_mem>>)
    tpu.wait_dma2 semaphore(%arg7 : memref<!tpu.dma_semaphore, #tpu.memory_space<semaphore_mem>>) src(%arg3 : memref<9x8x128xf32, #tpu.memory_space<any>>) dst(%arg6 : memref<9x8x128xf32, #tpu.memory_space<vmem>>)
    %c0 = arith.constant 0 : index
    %c0_0 = arith.constant 0 : index
    %0 = vector.load %arg4[%c0, %c0_0] : memref<128x256xf32, #tpu.memory_space<vmem>>, vector<128x256xf32>
    %c0_1 = arith.constant 0 : index
    %c0_2 = arith.constant 0 : index
    %1 = vector.load %arg5[%c0_1, %c0_2] : memref<256x384xf32, #tpu.memory_space<vmem>>, vector<256x384xf32>
    %2 = tpu.iota {dimensions = array<i32: 0>} : vector<8x128xi32>
    %c0_i32 = arith.constant 0 : i32
    %c8_i32 = arith.constant 8 : i32
    %3 = arith.addi %c0_i32, %c8_i32 : i32
    %c1_i32 = arith.constant 1 : i32
    scf.for %arg8 = %c0_i32 to %3 step %c1_i32  : i32 {
      %c1_i32_4 = arith.constant 1 : i32
      %4 = arith.muli %arg8, %c1_i32_4 : i32
      %c0_i32_5 = arith.constant 0 : i32
      %5 = arith.addi %c0_i32_5, %4 : i32
      %6 = arith.index_cast %5 : i32 to index
      %c0_6 = arith.constant 0 : index
      %c0_7 = arith.constant 0 : index
      %7 = vector.load %arg6[%6, %c0_6, %c0_7] : memref<9x8x128xf32, #tpu.memory_space<vmem>>, vector<1x8x128xf32>
      %8 = vector.shape_cast %7 : vector<1x8x128xf32> to vector<8x128xf32>
      %9 = vector.extract_strided_slice %8 {offsets = [2, 0], sizes = [1, 128], strides = [1, 1]} : vector<8x128xf32> to vector<1x128xf32>
      %cst = arith.constant 0.000000e+00 : f32
      %10 = vector.broadcast %cst : f32 to vector<1x128xf32>
      %cst_8 = arith.constant 0.000000e+00 : f32
      %11 = vector.broadcast %cst_8 : f32 to vector<1x128xf32>
      %cst_9 = arith.constant 0.000000e+00 : f32
      %12 = vector.broadcast %cst_9 : f32 to vector<1x128xf32>
      %c2_i32 = arith.constant 2 : i32
      %13 = arith.muli %5, %c2_i32 : i32
      %c0_i32_10 = arith.constant 0 : i32
      %14 = arith.addi %13, %c0_i32_10 : i32
      %15 = arith.index_cast %14 : i32 to index
      %16 = memref.load %arg0[%15] : memref<16xi32, #tpu.memory_space<smem>>
      %c2_i32_11 = arith.constant 2 : i32
      %17 = arith.muli %5, %c2_i32_11 : i32
      %c0_i32_12 = arith.constant 0 : i32
      %18 = arith.addi %17, %c0_i32_12 : i32
      %19 = arith.index_cast %18 : i32 to index
      %20 = memref.load %arg2[%19] : memref<16xf32, #tpu.memory_space<smem>>
      %21 = arith.index_cast %16 : i32 to index
      %c0_13 = arith.constant 0 : index
      %c0_14 = arith.constant 0 : index
      %22 = vector.load %arg6[%21, %c0_13, %c0_14] : memref<9x8x128xf32, #tpu.memory_space<vmem>>, vector<1x8x128xf32>
      %23 = vector.shape_cast %22 : vector<1x8x128xf32> to vector<8x128xf32>
      %24 = vector.extract_strided_slice %23 {offsets = [0, 0], sizes = [1, 128], strides = [1, 1]} : vector<8x128xf32> to vector<1x128xf32>
      %25 = vector.extract_strided_slice %23 {offsets = [1, 0], sizes = [1, 128], strides = [1, 1]} : vector<8x128xf32> to vector<1x128xf32>
      %26 = arith.addf %10, %24 : vector<1x128xf32>
      %27 = vector.broadcast %20 : f32 to vector<1x128xf32>
      %28 = arith.mulf %27, %24 : vector<1x128xf32>
      %29 = arith.addf %11, %28 : vector<1x128xf32>
      %cst_15 = arith.constant dense<0.000000e+00> : vector<1x256xf32>
      %30 = tpu.matmul %24, %0, %cst_15 {dimension_numbers = #tpu.dot_dimension_numbers<[1], [0], [0], [1], [0, 0, 1, 1], [], []>} : vector<1x128xf32>, vector<128x256xf32>, vector<1x256xf32> -> vector<1x256xf32>
      %31 = vector.extract_strided_slice %30 {offsets = [0, 0], sizes = [1, 128], strides = [1, 1]} : vector<1x256xf32> to vector<1x128xf32>
      %32 = arith.addf %9, %31 : vector<1x128xf32>
      %33 = vector.extract_strided_slice %30 {offsets = [0, 128], sizes = [1, 128], strides = [1, 1]} : vector<1x256xf32> to vector<1x128xf32>
      %34 = vector.broadcast %20 : f32 to vector<1x128xf32>
      %35 = arith.mulf %34, %33 : vector<1x128xf32>
      %36 = arith.addf %32, %35 : vector<1x128xf32>
      %37 = arith.negf %36 : vector<1x128xf32>
      %38 = math.exp %37 : vector<1x128xf32>
      %cst_16 = arith.constant 1.000000e+00 : f32
      %39 = vector.broadcast %cst_16 : f32 to vector<1x128xf32>
      %40 = arith.addf %39, %38 : vector<1x128xf32>
      %41 = arith.divf %39, %40 : vector<1x128xf32>
      %42 = arith.mulf %41, %25 : vector<1x128xf32>
      %43 = arith.addf %12, %42 : vector<1x128xf32>
      %c2_i32_17 = arith.constant 2 : i32
      %44 = arith.muli %5, %c2_i32_17 : i32
      %c1_i32_18 = arith.constant 1 : i32
      %45 = arith.addi %44, %c1_i32_18 : i32
      %46 = arith.index_cast %45 : i32 to index
      %47 = memref.load %arg0[%46] : memref<16xi32, #tpu.memory_space<smem>>
      %c2_i32_19 = arith.constant 2 : i32
      %48 = arith.muli %5, %c2_i32_19 : i32
      %c1_i32_20 = arith.constant 1 : i32
      %49 = arith.addi %48, %c1_i32_20 : i32
      %50 = arith.index_cast %49 : i32 to index
      %51 = memref.load %arg2[%50] : memref<16xf32, #tpu.memory_space<smem>>
      %52 = arith.index_cast %47 : i32 to index
      %c0_21 = arith.constant 0 : index
      %c0_22 = arith.constant 0 : index
      %53 = vector.load %arg6[%52, %c0_21, %c0_22] : memref<9x8x128xf32, #tpu.memory_space<vmem>>, vector<1x8x128xf32>
      %54 = vector.shape_cast %53 : vector<1x8x128xf32> to vector<8x128xf32>
      %55 = vector.extract_strided_slice %54 {offsets = [0, 0], sizes = [1, 128], strides = [1, 1]} : vector<8x128xf32> to vector<1x128xf32>
      %56 = vector.extract_strided_slice %54 {offsets = [1, 0], sizes = [1, 128], strides = [1, 1]} : vector<8x128xf32> to vector<1x128xf32>
      %57 = arith.addf %26, %55 : vector<1x128xf32>
      %58 = vector.broadcast %51 : f32 to vector<1x128xf32>
      %59 = arith.mulf %58, %55 : vector<1x128xf32>
      %60 = arith.addf %29, %59 : vector<1x128xf32>
      %cst_23 = arith.constant dense<0.000000e+00> : vector<1x256xf32>
      %61 = tpu.matmul %55, %0, %cst_23 {dimension_numbers = #tpu.dot_dimension_numbers<[1], [0], [0], [1], [0, 0, 1, 1], [], []>} : vector<1x128xf32>, vector<128x256xf32>, vector<1x256xf32> -> vector<1x256xf32>
      %62 = vector.extract_strided_slice %61 {offsets = [0, 0], sizes = [1, 128], strides = [1, 1]} : vector<1x256xf32> to vector<1x128xf32>
      %63 = arith.addf %9, %62 : vector<1x128xf32>
      %64 = vector.extract_strided_slice %61 {offsets = [0, 128], sizes = [1, 128], strides = [1, 1]} : vector<1x256xf32> to vector<1x128xf32>
      %65 = vector.broadcast %51 : f32 to vector<1x128xf32>
      %66 = arith.mulf %65, %64 : vector<1x128xf32>
      %67 = arith.addf %63, %66 : vector<1x128xf32>
      %68 = arith.negf %67 : vector<1x128xf32>
      %69 = math.exp %68 : vector<1x128xf32>
      %cst_24 = arith.constant 1.000000e+00 : f32
      %70 = vector.broadcast %cst_24 : f32 to vector<1x128xf32>
      %71 = arith.addf %70, %69 : vector<1x128xf32>
      %72 = arith.divf %70, %71 : vector<1x128xf32>
      %73 = arith.mulf %72, %56 : vector<1x128xf32>
      %74 = arith.addf %43, %73 : vector<1x128xf32>
      %75 = tpu.concatenate %57, %60 in 1 : vector<1x128xf32>, vector<1x128xf32> -> vector<1x256xf32>
      %cst_25 = arith.constant dense<0.000000e+00> : vector<1x384xf32>
      %76 = tpu.matmul %75, %1, %cst_25 {dimension_numbers = #tpu.dot_dimension_numbers<[1], [0], [0], [1], [0, 0, 1, 1], [], []>} : vector<1x256xf32>, vector<256x384xf32>, vector<1x384xf32> -> vector<1x384xf32>
      %77 = vector.extract_strided_slice %8 {offsets = [1, 0], sizes = [1, 128], strides = [1, 1]} : vector<8x128xf32> to vector<1x128xf32>
      %78 = arith.index_cast %5 : i32 to index
      %79 = memref.load %arg1[%78] : memref<8xi32, #tpu.memory_space<smem>>
      %c0_i32_26 = arith.constant 0 : i32
      %80 = arith.cmpi sgt, %79, %c0_i32_26 : i32
      %81 = arith.select %80, %74, %77 : vector<1x128xf32>
      %82 = vector.extract_strided_slice %8 {offsets = [3, 0], sizes = [1, 128], strides = [1, 1]} : vector<8x128xf32> to vector<1x128xf32>
      %83 = vector.extract_strided_slice %76 {offsets = [0, 0], sizes = [1, 128], strides = [1, 1]} : vector<1x384xf32> to vector<1x128xf32>
      %84 = arith.addf %82, %83 : vector<1x128xf32>
      %85 = arith.negf %84 : vector<1x128xf32>
      %86 = math.exp %85 : vector<1x128xf32>
      %cst_27 = arith.constant 1.000000e+00 : f32
      %87 = vector.broadcast %cst_27 : f32 to vector<1x128xf32>
      %88 = arith.addf %87, %86 : vector<1x128xf32>
      %89 = arith.divf %87, %88 : vector<1x128xf32>
      %90 = vector.extract_strided_slice %8 {offsets = [4, 0], sizes = [1, 128], strides = [1, 1]} : vector<8x128xf32> to vector<1x128xf32>
      %91 = vector.extract_strided_slice %76 {offsets = [0, 128], sizes = [1, 128], strides = [1, 1]} : vector<1x384xf32> to vector<1x128xf32>
      %92 = arith.addf %90, %91 : vector<1x128xf32>
      %93 = arith.negf %92 : vector<1x128xf32>
      %94 = math.exp %93 : vector<1x128xf32>
      %cst_28 = arith.constant 1.000000e+00 : f32
      %95 = vector.broadcast %cst_28 : f32 to vector<1x128xf32>
      %96 = arith.addf %95, %94 : vector<1x128xf32>
      %97 = arith.divf %95, %96 : vector<1x128xf32>
      %98 = vector.extract_strided_slice %8 {offsets = [5, 0], sizes = [1, 128], strides = [1, 1]} : vector<8x128xf32> to vector<1x128xf32>
      %99 = vector.extract_strided_slice %76 {offsets = [0, 256], sizes = [1, 128], strides = [1, 1]} : vector<1x384xf32> to vector<1x128xf32>
      %100 = arith.addf %98, %99 : vector<1x128xf32>
      %101 = math.tanh %100 : vector<1x128xf32>
      %102 = arith.mulf %89, %101 : vector<1x128xf32>
      %103 = arith.addf %102, %81 : vector<1x128xf32>
      %104 = math.tanh %103 : vector<1x128xf32>
      %105 = arith.mulf %97, %104 : vector<1x128xf32>
      %c0_i32_29 = arith.constant 0 : i32
      %106 = vector.broadcast %c0_i32_29 : i32 to vector<8x128xi32>
      %107 = arith.cmpi eq, %2, %106 : vector<8x128xi32>
      %c1_i32_30 = arith.constant 1 : i32
      %108 = vector.broadcast %c1_i32_30 : i32 to vector<8x128xi32>
      %109 = arith.cmpi eq, %2, %108 : vector<8x128xi32>
      %110 = vector.shape_cast %103 : vector<1x128xf32> to vector<1x128xf32>
      %111 = vector.broadcast %110 : vector<1x128xf32> to vector<8x128xf32>
      %112 = arith.select %109, %111, %8 : vector<8x128xi1>, vector<8x128xf32>
      %113 = vector.shape_cast %105 : vector<1x128xf32> to vector<1x128xf32>
      %114 = vector.broadcast %113 : vector<1x128xf32> to vector<8x128xf32>
      %115 = arith.select %107, %114, %112 : vector<8x128xi1>, vector<8x128xf32>
      %116 = arith.index_cast %5 : i32 to index
      %c0_31 = arith.constant 0 : index
      %c0_32 = arith.constant 0 : index
      %117 = vector.load %arg6[%116, %c0_31, %c0_32] : memref<9x8x128xf32, #tpu.memory_space<vmem>>, vector<1x8x128xf32>
      %118 = vector.shape_cast %117 : vector<1x8x128xf32> to vector<8x128xf32>
      %119 = vector.shape_cast %115 : vector<8x128xf32> to vector<1x8x128xf32>
      tpu.vector_store %arg6[%116, %c0_31, %c0_32], %119 {strides = array<i32>} : memref<9x8x128xf32, #tpu.memory_space<vmem>>, vector<1x8x128xf32>,
    }
    %c8_i32_3 = arith.constant 8 : i32
    return
  }
}

</mosaic_0001>

<llo_original>
// kernel: single_round_graph_lstm.1
$region0: #{single_round_graph_lstm.1}
  #allocation0 [shape = 'u32[]', space=smem, size = 0x4, offset = 0x4, fixed_abs, tag = 'smem constant byte address 0x4 - core index']
  #allocation1 [shape = 'u32[72,128]{1,0:T(1,128)}', space=vmem, size = 0x9000, scoped, tag = 'internal scratch']
  #allocation2 [shape = 's32[1]{0}', space=sflag, size = 0x4, scoped, tag = 'scratch operand']
  #allocation8 [shape = 's32[]', space=sflag, size = 0x4, offset = 0, fixed_abs, tag = 'sflag constant byte address 0x0 - dummy sync flag']
  %s0 = inlined_call_operand.vmem [shape: s32[16], index: 0, kind: input, shape index: {}]
  %s1 = inlined_call_operand.vmem [shape: s32[8], index: 1, kind: input, shape index: {}]
  %s2 = inlined_call_operand.vmem [shape: f32[16], index: 2, kind: input, shape index: {}]
  %s3 = inlined_call_operand.vmem [shape: f32[9,8,128], index: 3, kind: input, shape index: {}]
  %s4 = inlined_call_operand.vmem [shape: f32[128,256], index: 4, kind: input, shape index: {}]
  %s5 = inlined_call_operand.vmem [shape: f32[256,384], index: 5, kind: input, shape index: {}]
  %s6 = inlined_call_operand.vmem [shape: f32[9,8,128], index: 6, kind: output, shape index: {}]
  %s7 = sld [smem:[#allocation0]]
  $region68: #{single_round_graph_lstm.1} parent=0
    _
  %s9 = ssub.s32 1, %s7
  %s10 = scalar_select 0, %s9, %s7
  $region1: #{single_round_graph_lstm.1} parent=0
    #allocation3 [shape = 'u8[512]{0}', space=smem, size = 0x200, scoped, tag = 'input window, operand 0, single buffered']
    #allocation4 [shape = 's32[1]{0}', space=sflag, size = 0x4, scoped, tag = 'scoped memory for single_round_graph_lstm.1']
    #allocation5 [shape = 'u8[512]{0}', space=smem, size = 0x200, scoped, tag = 'input window, operand 1, single buffered']
    #allocation6 [shape = 's32[1]{0}', space=sflag, size = 0x4, scoped, tag = 'scoped memory for single_round_graph_lstm.1']
    #allocation7 [shape = 'u8[512]{0}', space=smem, size = 0x200, scoped, tag = 'input window, operand 2, single buffered']
    %11 = vsyncpa [#allocation4], 0
    %12 = vsyncpa [#allocation6], 0
    // Predicated region
    $region2: #{single_round_graph_lstm.1} parent=1 // pred_check
      _
    $region3: #{single_round_graph_lstm.1} parent=1 // pred_check_branch
      %14 = sbr.rel (0) target = $region5
    $region4: #{single_round_graph_lstm.1} parent=1 // pred_region
      %16 = vsyncadd [#allocation4], 0
      %s18 = sshll.u32 %s0, 4
      %s19 = int_to_ptr.vmem [resolvable:$true] %s18
      %21 = dma.vmem_to_smem %s19, 16, [#allocation3], [#allocation4]
    $region5: #{single_round_graph_lstm.1} parent=1 // pred_fallthru
      _
    // Predicated region
    $region6: #{single_round_graph_lstm.1} parent=1 // pred_check
      _
    $region7: #{single_round_graph_lstm.1} parent=1 // pred_check_branch
      %23 = sbr.rel (0) target = $region9
    $region8: #{single_round_graph_lstm.1} parent=1 // pred_region
      %25 = vsyncadd [#allocation6], 0
      %s27 = sshll.u32 %s1, 4
      %s28 = int_to_ptr.vmem [resolvable:$true] %s27
      %30 = dma.vmem_to_smem %s28, 16, [#allocation5], [#allocation6]
    $region9: #{single_round_graph_lstm.1} parent=1 // pred_fallthru
      _
    // Predicated region
    $region10: #{single_round_graph_lstm.1} parent=1 // pred_check
      _
    $region11: #{single_round_graph_lstm.1} parent=1 // pred_check_branch
      %32 = sbr.rel (0) target = $region13
    $region12: #{single_round_graph_lstm.1} parent=1 // pred_region
      %34 = vsyncadd [#allocation6], 0
      %s36 = sshll.u32 %s2, 4
      %s37 = int_to_ptr.vmem [resolvable:$true] %s36
      %39 = dma.vmem_to_smem %s37, 16, [#allocation7], [#allocation6]
    $region13: #{single_round_graph_lstm.1} parent=1 // pred_fallthru
      _
    // Predicated region
    $region14: #{single_round_graph_lstm.1} parent=1 // pred_check
      _
    $region15: #{single_round_graph_lstm.1} parent=1 // pred_check_branch
      %41 = sbr.rel (0) target = $region17
    $region16: #{single_round_graph_lstm.1} parent=1 // pred_region
      _
    $region17: #{single_round_graph_lstm.1} parent=1 // pred_fallthru
      _
    // Predicated region
    $region18: #{single_round_graph_lstm.1} parent=1 // pred_check
      _
    $region19: #{single_round_graph_lstm.1} parent=1 // pred_check_branch
      %43 = sbr.rel (0) target = $region21
    $region20: #{single_round_graph_lstm.1} parent=1 // pred_region
      _
    $region21: #{single_round_graph_lstm.1} parent=1 // pred_fallthru
      _
    // Predicated region
    $region22: #{single_round_graph_lstm.1} parent=1 // pred_check
      _
    $region23: #{single_round_graph_lstm.1} parent=1 // pred_check_branch
      %45 = sbr.rel (0) target = $region25
    $region24: #{single_round_graph_lstm.1} parent=1 // pred_region
      %47 = dma.done [#allocation4], 16
    $region25: #{single_round_graph_lstm.1} parent=1 // pred_fallthru
      _
    // Predicated region
    $region26: #{single_round_graph_lstm.1} parent=1 // pred_check
      _
    $region27: #{single_round_graph_lstm.1} parent=1 // pred_check_branch
      %49 = sbr.rel (0) target = $region29
    $region28: #{single_round_graph_lstm.1} parent=1 // pred_region
      %51 = dma.done [#allocation6], 16
    $region29: #{single_round_graph_lstm.1} parent=1 // pred_fallthru
      _
    // Predicated region
    $region30: #{single_round_graph_lstm.1} parent=1 // pred_check
      _
    $region31: #{single_round_graph_lstm.1} parent=1 // pred_check_branch
      %53 = sbr.rel (0) target = $region33
    $region32: #{single_round_graph_lstm.1} parent=1 // pred_region
      %55 = dma.done [#allocation6], 16
    $region33: #{single_round_graph_lstm.1} parent=1 // pred_fallthru
      _
    %56 = sfence
    // Predicated region
    $region34: #{single_round_graph_lstm.1} parent=1 // pred_check
      _
    $region35: #{single_round_graph_lstm.1} parent=1 // pred_check_branch
      %58 = sbr.rel (0) target = $region37
    $region36: #{single_round_graph_lstm.1} parent=1 // pred_region
      loop: start=0, step=1, limit=1
      $region38: #{single_round_graph_lstm.1} parent=36 // loop_pre_header
        _
      $region39: #{single_round_graph_lstm.1} parent=36 // loop_header
        %s60 = sphi 0, %s64
        %p61 = scmp.ge.s32.totalorder %s60, 1
        %s65 = sphi %s3, %s3
        %s66 = sphi %s6, %s6
      $region40: #{single_round_graph_lstm.1} parent=36 // loop_header_branch
        %63 = sbr.rel (%p61) target = $region44
      $region41: #{single_round_graph_lstm.1} parent=36 // loop_body
        %v67 = vld [vmem:[%s65] sm:$0xff]
        %68 = vst [vmem:[%s66] sm:$0xff] %v67
        %v69 = vld [vmem:[%s65 + $0x8] sm:$0xff]
        %70 = vst [vmem:[%s66 + $0x8] sm:$0xff] %v69
        %v71 = vld [vmem:[%s65 + $0x10] sm:$0xff]
        %72 = vst [vmem:[%s66 + $0x10] sm:$0xff] %v71
        %v73 = vld [vmem:[%s65 + $0x18] sm:$0xff]
        %74 = vst [vmem:[%s66 + $0x18] sm:$0xff] %v73
        %v75 = vld [vmem:[%s65 + $0x20] sm:$0xff]
        %76 = vst [vmem:[%s66 + $0x20] sm:$0xff] %v75
        %v77 = vld [vmem:[%s65 + $0x28] sm:$0xff]
        %78 = vst [vmem:[%s66 + $0x28] sm:$0xff] %v77
        %v79 = vld [vmem:[%s65 + $0x30] sm:$0xff]
        %80 = vst [vmem:[%s66 + $0x30] sm:$0xff] %v79
        %v81 = vld [vmem:[%s65 + $0x38] sm:$0xff]
        %82 = vst [vmem:[%s66 + $0x38] sm:$0xff] %v81
        %v83 = vld [vmem:[%s65 + $0x40] sm:$0xff]
        %84 = vst [vmem:[%s66 + $0x40] sm:$0xff] %v83
      $region42: #{single_round_graph_lstm.1} parent=36 // loop_footer
        %s64 = sadd.s32 1, %s60
      $region43: #{single_round_graph_lstm.1} parent=36 // loop_footer_branch
        %59 = sbr.rel target = $region39
      $region44: #{single_round_graph_lstm.1} parent=36 // loop_exit
        _
    $region37: #{single_round_graph_lstm.1} parent=1 // pred_fallthru
      _
    // Predicated region
    $region45: #{single_round_graph_lstm.1} parent=1 // pred_check
      _
    $region46: #{single_round_graph_lstm.1} parent=1 // pred_check_branch
      %86 = sbr.rel target = $region48
    $region47: #{single_round_graph_lstm.1} parent=1 // pred_region
      _
    $region48: #{single_round_graph_lstm.1} parent=1 // pred_fallthru
      _
    // Predicated region
    $region49: #{single_round_graph_lstm.1} parent=1 // pred_check
      _
    $region50: #{single_round_graph_lstm.1} parent=1 // pred_check_branch
      %89 = sbr.rel (0) target = $region52
    $region51: #{single_round_graph_lstm.1} parent=1 // pred_region
      %90 = vsyncadd [#allocation2], 1152
    $region52: #{single_round_graph_lstm.1} parent=1 // pred_fallthru
      _
    %s91 = smul.u32 9, 8
    %s92 = smul.u32 %s91, 1
    %s93 = sshll.u32 %s92, 4
    %94 = dma.done [#allocation2], %s93
    %v95 = vld [vmem:[%s4] sm:$0xff]
    %v96 = vld [vmem:[%s4 + $0x8] sm:$0xff]
    %v97 = vld [vmem:[%s4 + $0x10] sm:$0xff]
    %v98 = vld [vmem:[%s4 + $0x18] sm:$0xff]
    %v99 = vld [vmem:[%s4 + $0x20] sm:$0xff]
    %v100 = vld [vmem:[%s4 + $0x28] sm:$0xff]
    %v101 = vld [vmem:[%s4 + $0x30] sm:$0xff]
    %v102 = vld [vmem:[%s4 + $0x38] sm:$0xff]
    %v103 = vld [vmem:[%s4 + $0x40] sm:$0xff]
    %v104 = vld [vmem:[%s4 + $0x48] sm:$0xff]
    %v105 = vld [vmem:[%s4 + $0x50] sm:$0xff]
    %v106 = vld [vmem:[%s4 + $0x58] sm:$0xff]
    %v107 = vld [vmem:[%s4 + $0x60] sm:$0xff]
    %v108 = vld [vmem:[%s4 + $0x68] sm:$0xff]
    %v109 = vld [vmem:[%s4 + $0x70] sm:$0xff]
    %v110 = vld [vmem:[%s4 + $0x78] sm:$0xff]
    %v111 = vld [vmem:[%s4 + $0x80] sm:$0xff]
    %v112 = vld [vmem:[%s4 + $0x88] sm:$0xff]
    %v113 = vld [vmem:[%s4 + $0x90] sm:$0xff]
    %v114 = vld [vmem:[%s4 + $0x98] sm:$0xff]
    %v115 = vld [vmem:[%s4 + $0xa0] sm:$0xff]
    %v116 = vld [vmem:[%s4 + $0xa8] sm:$0xff]
    %v117 = vld [vmem:[%s4 + $0xb0] sm:$0xff]
    %v118 = vld [vmem:[%s4 + $0xb8] sm:$0xff]
    %v119 = vld [vmem:[%s4 + $0xc0] sm:$0xff]
    %v120 = vld [vmem:[%s4 + $0xc8] sm:$0xff]
    %v121 = vld [vmem:[%s4 + $0xd0] sm:$0xff]
    %v122 = vld [vmem:[%s4 + $0xd8] sm:$0xff]
    %v123 = vld [vmem:[%s4 + $0xe0] sm:$0xff]
    %v124 = vld [vmem:[%s4 + $0xe8] sm:$0xff]
    %v125 = vld [vmem:[%s4 + $0xf0] sm:$0xff]
    %v126 = vld [vmem:[%s4 + $0xf8] sm:$0xff]
    %v127 = vld [vmem:[%s5] sm:$0xff]
    %v128 = vld [vmem:[%s5 + $0x8] sm:$0xff]
    %v129 = vld [vmem:[%s5 + $0x10] sm:$0xff]
    %v130 = vld [vmem:[%s5 + $0x18] sm:$0xff]
    %v131 = vld [vmem:[%s5 + $0x20] sm:$0xff]
    %v132 = vld [vmem:[%s5 + $0x28] sm:$0xff]
    %v133 = vld [vmem:[%s5 + $0x30] sm:$0xff]
    %v134 = vld [vmem:[%s5 + $0x38] sm:$0xff]
    %v135 = vld [vmem:[%s5 + $0x40] sm:$0xff]
    %v136 = vld [vmem:[%s5 + $0x48] sm:$0xff]
    %v137 = vld [vmem:[%s5 + $0x50] sm:$0xff]
    %v138 = vld [vmem:[%s5 + $0x58] sm:$0xff]
    %v139 = vld [vmem:[%s5 + $0x60] sm:$0xff]
    %v140 = vld [vmem:[%s5 + $0x68] sm:$0xff]
    %v141 = vld [vmem:[%s5 + $0x70] sm:$0xff]
    %v142 = vld [vmem:[%s5 + $0x78] sm:$0xff]
    %v143 = vld [vmem:[%s5 + $0x80] sm:$0xff]
    %v144 = vld [vmem:[%s5 + $0x88] sm:$0xff]
    %v145 = vld [vmem:[%s5 + $0x90] sm:$0xff]
    %v146 = vld [vmem:[%s5 + $0x98] sm:$0xff]
    %v147 = vld [vmem:[%s5 + $0xa0] sm:$0xff]
    %v148 = vld [vmem:[%s5 + $0xa8] sm:$0xff]
    %v149 = vld [vmem:[%s5 + $0xb0] sm:$0xff]
    %v150 = vld [vmem:[%s5 + $0xb8] sm:$0xff]
    %v151 = vld [vmem:[%s5 + $0xc0] sm:$0xff]
    %v152 = vld [vmem:[%s5 + $0xc8] sm:$0xff]
    %v153 = vld [vmem:[%s5 + $0xd0] sm:$0xff]
    %v154 = vld [vmem:[%s5 + $0xd8] sm:$0xff]
    %v155 = vld [vmem:[%s5 + $0xe0] sm:$0xff]
    %v156 = vld [vmem:[%s5 + $0xe8] sm:$0xff]
    %v157 = vld [vmem:[%s5 + $0xf0] sm:$0xff]
    %v158 = vld [vmem:[%s5 + $0xf8] sm:$0xff]
    %v159 = vld [vmem:[%s5 + $0x100] sm:$0xff]
    %v160 = vld [vmem:[%s5 + $0x108] sm:$0xff]
    %v161 = vld [vmem:[%s5 + $0x110] sm:$0xff]
    %v162 = vld [vmem:[%s5 + $0x118] sm:$0xff]
    %v163 = vld [vmem:[%s5 + $0x120] sm:$0xff]
    %v164 = vld [vmem:[%s5 + $0x128] sm:$0xff]
    %v165 = vld [vmem:[%s5 + $0x130] sm:$0xff]
    %v166 = vld [vmem:[%s5 + $0x138] sm:$0xff]
    %v167 = vld [vmem:[%s5 + $0x140] sm:$0xff]
    %v168 = vld [vmem:[%s5 + $0x148] sm:$0xff]
    %v169 = vld [vmem:[%s5 + $0x150] sm:$0xff]
    %v170 = vld [vmem:[%s5 + $0x158] sm:$0xff]
    %v171 = vld [vmem:[%s5 + $0x160] sm:$0xff]
    %v172 = vld [vmem:[%s5 + $0x168] sm:$0xff]
    %v173 = vld [vmem:[%s5 + $0x170] sm:$0xff]
    %v174 = vld [vmem:[%s5 + $0x178] sm:$0xff]
    %v175 = vld [vmem:[%s5 + $0x180] sm:$0xff]
    %v176 = vld [vmem:[%s5 + $0x188] sm:$0xff]
    %v177 = vld [vmem:[%s5 + $0x190] sm:$0xff]
    %v178 = vld [vmem:[%s5 + $0x198] sm:$0xff]
    %v179 = vld [vmem:[%s5 + $0x1a0] sm:$0xff]
    %v180 = vld [vmem:[%s5 + $0x1a8] sm:$0xff]
    %v181 = vld [vmem:[%s5 + $0x1b0] sm:$0xff]
    %v182 = vld [vmem:[%s5 + $0x1b8] sm:$0xff]
    %v183 = vld [vmem:[%s5 + $0x1c0] sm:$0xff]
    %v184 = vld [vmem:[%s5 + $0x1c8] sm:$0xff]
    %v185 = vld [vmem:[%s5 + $0x1d0] sm:$0xff]
    %v186 = vld [vmem:[%s5 + $0x1d8] sm:$0xff]
    %v187 = vld [vmem:[%s5 + $0x1e0] sm:$0xff]
    %v188 = vld [vmem:[%s5 + $0x1e8] sm:$0xff]
    %v189 = vld [vmem:[%s5 + $0x1f0] sm:$0xff]
    %v190 = vld [vmem:[%s5 + $0x1f8] sm:$0xff]
    %v191 = vld [vmem:[%s5 + $0x200] sm:$0xff]
    %v192 = vld [vmem:[%s5 + $0x208] sm:$0xff]
    %v193 = vld [vmem:[%s5 + $0x210] sm:$0xff]
    %v194 = vld [vmem:[%s5 + $0x218] sm:$0xff]
    %v195 = vld [vmem:[%s5 + $0x220] sm:$0xff]
    %v196 = vld [vmem:[%s5 + $0x228] sm:$0xff]
    %v197 = vld [vmem:[%s5 + $0x230] sm:$0xff]
    %v198 = vld [vmem:[%s5 + $0x238] sm:$0xff]
    %v199 = vld [vmem:[%s5 + $0x240] sm:$0xff]
    %v200 = vld [vmem:[%s5 + $0x248] sm:$0xff]
    %v201 = vld [vmem:[%s5 + $0x250] sm:$0xff]
    %v202 = vld [vmem:[%s5 + $0x258] sm:$0xff]
    %v203 = vld [vmem:[%s5 + $0x260] sm:$0xff]
    %v204 = vld [vmem:[%s5 + $0x268] sm:$0xff]
    %v205 = vld [vmem:[%s5 + $0x270] sm:$0xff]
    %v206 = vld [vmem:[%s5 + $0x278] sm:$0xff]
    %v207 = vld [vmem:[%s5 + $0x280] sm:$0xff]
    %v208 = vld [vmem:[%s5 + $0x288] sm:$0xff]
    %v209 = vld [vmem:[%s5 + $0x290] sm:$0xff]
    %v210 = vld [vmem:[%s5 + $0x298] sm:$0xff]
    %v211 = vld [vmem:[%s5 + $0x2a0] sm:$0xff]
    %v212 = vld [vmem:[%s5 + $0x2a8] sm:$0xff]
    %v213 = vld [vmem:[%s5 + $0x2b0] sm:$0xff]
    %v214 = vld [vmem:[%s5 + $0x2b8] sm:$0xff]
    %v215 = vld [vmem:[%s5 + $0x2c0] sm:$0xff]
    %v216 = vld [vmem:[%s5 + $0x2c8] sm:$0xff]
    %v217 = vld [vmem:[%s5 + $0x2d0] sm:$0xff]
    %v218 = vld [vmem:[%s5 + $0x2d8] sm:$0xff]
    %v219 = vld [vmem:[%s5 + $0x2e0] sm:$0xff]
    %v220 = vld [vmem:[%s5 + $0x2e8] sm:$0xff]
    %v221 = vld [vmem:[%s5 + $0x2f0] sm:$0xff]
    %v222 = vld [vmem:[%s5 + $0x2f8] sm:$0xff]
    %v223 = vlaneseq
    %v224 = vshrl.u32 %v223, 7
    loop: start=0, step=1, limit=8
    $region53: #{single_round_graph_lstm.1} parent=1 // loop_pre_header
      _
    $region54: #{single_round_graph_lstm.1} parent=1 // loop_header
      %s226 = sphi 0, %s230
      %p227 = scmp.ge.s32.totalorder %s226, 8
    $region55: #{single_round_graph_lstm.1} parent=1 // loop_header_branch
      %229 = sbr.rel (%p227) target = $region59
    $region56: #{single_round_graph_lstm.1} parent=1 // loop_body
      %s231 = smul.u32 %s226, 8
      %s232 = scalar_lea.vmem %s6, %s231
      %v233 = vld [vmem:[%s232] sm:$0xff]
      %s234 = smul.u32 %s226, 2
      %s235 = sld [smem:[#allocation3 + %s234]]
      %s236 = sld [smem:[#allocation7 + %s234]]
      %s237 = smul.u32 %s235, 8
      %s238 = scalar_lea.vmem %s6, %s237
      %v239 = vld [vmem:[%s238] sm:$0xff]
      %v240 = vadd.f32 %v239, 0.0
      %v241 = vstv %s236
      %v242 = vmul.f32 %v241, %v239
      %v243 = vadd.f32 %v242, 0.0
      %244 = vmatpush.msra.mxu0 %v125
      %245 = vmatpush.msra.mxu0 %v123
      %246 = vmatpush.msra.mxu0 %v121
      %247 = vmatpush.msra.mxu0 %v119
      %248 = vmatpush.msra.mxu0 %v117
      %249 = vmatpush.msra.mxu0 %v115
      %250 = vmatpush.msra.mxu0 %v113
      %251 = vmatpush.msra.mxu0 %v111
      %252 = vmatpush.msra.mxu0 %v109
      %253 = vmatpush.msra.mxu0 %v107
      %254 = vmatpush.msra.mxu0 %v105
      %255 = vmatpush.msra.mxu0 %v103
      %256 = vmatpush.msra.mxu0 %v101
      %257 = vmatpush.msra.mxu0 %v99
      %258 = vmatpush.msra.mxu0 %v97
      %259 = vmatpush.msra.mxu0 %v95
      %260 = vmatmul.f32.gmra.mxu0 %v239
      %v261 = vpop.f32.mrf.mxu0
      %v262 = vadd.f32 0.0, %v261
      %263 = vdwg.mxu0
      %264 = vmatpush.msra.mxu0 %v126
      %265 = vmatpush.msra.mxu0 %v124
      %266 = vmatpush.msra.mxu0 %v122
      %267 = vmatpush.msra.mxu0 %v120
      %268 = vmatpush.msra.mxu0 %v118
      %269 = vmatpush.msra.mxu0 %v116
      %270 = vmatpush.msra.mxu0 %v114
      %271 = vmatpush.msra.mxu0 %v112
      %272 = vmatpush.msra.mxu0 %v110
      %273 = vmatpush.msra.mxu0 %v108
      %274 = vmatpush.msra.mxu0 %v106
      %275 = vmatpush.msra.mxu0 %v104
      %276 = vmatpush.msra.mxu0 %v102
      %277 = vmatpush.msra.mxu0 %v100
      %278 = vmatpush.msra.mxu0 %v98
      %279 = vmatpush.msra.mxu0 %v96
      %280 = vmatmul.f32.gmra.mxu0 %v239
      %v281 = vpop.f32.mrf.mxu0
      %v282 = vadd.f32 0.0, %v281
      %283 = vdwg.mxu0
      %v285 = vrot.slane %v262, 6
      %v287 = vadd.f32 %v233, %v285
      %v288 = vmul.f32 %v241, %v282
      %v290 = vrot.slane %v288, 6
      %v292 = vadd.f32 %v287, %v290
      %v293 = vxor.u32 %v292, 2147483648
      %v294 = vmul.f32 %v293, 1.442695
      %v295 = vpow.pop %v294
      %v296 = vadd.f32 %v295, 1.0
      %v297 = vrcp.pop %v296
      %v298 = vmul.f32 %v296, %v297
      %v299 = vsub.f32 1.0, %v298
      %v300 = vmul.f32 %v297, %v299
      %v301 = vadd.f32 %v297, %v300
      %vm302 = vweird.f32 %v296
      %vm303 = vweird.f32 %v297
      %vm304 = vmor %vm302, %vm303
      %v305 = vsel %vm304, %v297, %v301
      %v306 = vand.u32 2147483647, %v296
      %vm307 = vcmp.eq.f32.partialorder %v306, 8.507059e+37
      %v308 = vand.u32 %v296, 2147483648
      %v309 = vor.u32 1.1754944e-38, %v308
      %v310 = vsel %vm307, %v309, %v305
      %v311 = vmul.f32 1.0, %v310
      %v313 = vrot.slane %v239, 7
      %v315 = vmul.f32 %v311, %v313
      %v316 = vadd.f32 %v315, 0.0
      %s317 = sadd.s32 %s234, 1
      %s318 = sld [smem:[#allocation3 + %s317]]
      %s319 = sld [smem:[#allocation7 + %s317]]
      %s320 = smul.u32 %s318, 8
      %s321 = scalar_lea.vmem %s6, %s320
      %v322 = vld [vmem:[%s321] sm:$0xff]
      %v323 = vadd.f32 %v240, %v322
      %v324 = vstv %s319
      %v325 = vmul.f32 %v324, %v322
      %v326 = vadd.f32 %v243, %v325
      %327 = vmatpush.msra.mxu0 %v125
      %328 = vmatpush.msra.mxu0 %v123
      %329 = vmatpush.msra.mxu0 %v121
      %330 = vmatpush.msra.mxu0 %v119
      %331 = vmatpush.msra.mxu0 %v117
      %332 = vmatpush.msra.mxu0 %v115
      %333 = vmatpush.msra.mxu0 %v113
      %334 = vmatpush.msra.mxu0 %v111
      %335 = vmatpush.msra.mxu0 %v109
      %336 = vmatpush.msra.mxu0 %v107
      %337 = vmatpush.msra.mxu0 %v105
      %338 = vmatpush.msra.mxu0 %v103
      %339 = vmatpush.msra.mxu0 %v101
      %340 = vmatpush.msra.mxu0 %v99
      %341 = vmatpush.msra.mxu0 %v97
      %342 = vmatpush.msra.mxu0 %v95
      %343 = vmatmul.f32.gmra.mxu0 %v322
      %v344 = vpop.f32.mrf.mxu0
      %v345 = vadd.f32 0.0, %v344
      %346 = vdwg.mxu0
      %347 = vmatpush.msra.mxu0 %v126
      %348 = vmatpush.msra.mxu0 %v124
      %349 = vmatpush.msra.mxu0 %v122
      %350 = vmatpush.msra.mxu0 %v120
      %351 = vmatpush.msra.mxu0 %v118
      %352 = vmatpush.msra.mxu0 %v116
      %353 = vmatpush.msra.mxu0 %v114
      %354 = vmatpush.msra.mxu0 %v112
      %355 = vmatpush.msra.mxu0 %v110
      %356 = vmatpush.msra.mxu0 %v108
      %357 = vmatpush.msra.mxu0 %v106
      %358 = vmatpush.msra.mxu0 %v104
      %359 = vmatpush.msra.mxu0 %v102
      %360 = vmatpush.msra.mxu0 %v100
      %361 = vmatpush.msra.mxu0 %v98
      %362 = vmatpush.msra.mxu0 %v96
      %363 = vmatmul.f32.gmra.mxu0 %v322
      %v364 = vpop.f32.mrf.mxu0
      %v365 = vadd.f32 0.0, %v364
      %366 = vdwg.mxu0
      %v368 = vrot.slane %v345, 6
      %v370 = vadd.f32 %v233, %v368
      %v371 = vmul.f32 %v324, %v365
      %v373 = vrot.slane %v371, 6
      %v375 = vadd.f32 %v370, %v373
      %v376 = vxor.u32 %v375, 2147483648
      %v377 = vmul.f32 %v376, 1.442695
      %v378 = vpow.pop %v377
      %v379 = vadd.f32 %v378, 1.0
      %v380 = vrcp.pop %v379
      %v381 = vmul.f32 %v379, %v380
      %v382 = vsub.f32 1.0, %v381
      %v383 = vmul.f32 %v380, %v382
      %v384 = vadd.f32 %v380, %v383
      %vm385 = vweird.f32 %v379
      %vm386 = vweird.f32 %v380
      %vm387 = vmor %vm385, %vm386
      %v388 = vsel %vm387, %v380, %v384
      %v389 = vand.u32 2147483647, %v379
      %vm390 = vcmp.eq.f32.partialorder %v389, 8.507059e+37
      %v391 = vand.u32 %v379, 2147483648
      %v392 = vor.u32 1.1754944e-38, %v391
      %v393 = vsel %vm390, %v392, %v388
      %v394 = vmul.f32 1.0, %v393
      %v396 = vrot.slane %v322, 7
      %v398 = vmul.f32 %v394, %v396
      %v399 = vadd.f32 %v316, %v398
      %400 = vmatpush.msra.mxu0 %v172
      %401 = vmatpush.msra.mxu0 %v169
      %402 = vmatpush.msra.mxu0 %v166
      %403 = vmatpush.msra.mxu0 %v163
      %404 = vmatpush.msra.mxu0 %v160
      %405 = vmatpush.msra.mxu0 %v157
      %406 = vmatpush.msra.mxu0 %v154
      %407 = vmatpush.msra.mxu0 %v151
      %408 = vmatpush.msra.mxu0 %v148
      %409 = vmatpush.msra.mxu0 %v145
      %410 = vmatpush.msra.mxu0 %v142
      %411 = vmatpush.msra.mxu0 %v139
      %412 = vmatpush.msra.mxu0 %v136
      %413 = vmatpush.msra.mxu0 %v133
      %414 = vmatpush.msra.mxu0 %v130
      %415 = vmatpush.msra.mxu0 %v127
      %416 = vmatmul.f32.gmra.mxu0 %v323
      %v417 = vpop.f32.mrf.mxu0
      %v418 = vadd.f32 0.0, %v417
      %419 = vdwg.mxu0
      %420 = vmatpush.msra.mxu0 %v220
      %421 = vmatpush.msra.mxu0 %v217
      %422 = vmatpush.msra.mxu0 %v214
      %423 = vmatpush.msra.mxu0 %v211
      %424 = vmatpush.msra.mxu0 %v208
      %425 = vmatpush.msra.mxu0 %v205
      %426 = vmatpush.msra.mxu0 %v202
      %427 = vmatpush.msra.mxu0 %v199
      %428 = vmatpush.msra.mxu0 %v196
      %429 = vmatpush.msra.mxu0 %v193
      %430 = vmatpush.msra.mxu0 %v190
      %431 = vmatpush.msra.mxu0 %v187
      %432 = vmatpush.msra.mxu0 %v184
      %433 = vmatpush.msra.mxu0 %v181
      %434 = vmatpush.msra.mxu0 %v178
      %435 = vmatpush.msra.mxu0 %v175
      %436 = vmatmul.f32.gmra.mxu0 %v326
      %v437 = vpop.f32.mrf.mxu0
      %v438 = vadd.f32 %v418, %v437
      %439 = vdwg.mxu0
      %440 = vmatpush.msra.mxu0 %v173
      %441 = vmatpush.msra.mxu0 %v170
      %442 = vmatpush.msra.mxu0 %v167
      %443 = vmatpush.msra.mxu0 %v164
      %444 = vmatpush.msra.mxu0 %v161
      %445 = vmatpush.msra.mxu0 %v158
      %446 = vmatpush.msra.mxu0 %v155
      %447 = vmatpush.msra.mxu0 %v152
      %448 = vmatpush.msra.mxu0 %v149
      %449 = vmatpush.msra.mxu0 %v146
      %450 = vmatpush.msra.mxu0 %v143
      %451 = vmatpush.msra.mxu0 %v140
      %452 = vmatpush.msra.mxu0 %v137
      %453 = vmatpush.msra.mxu0 %v134
      %454 = vmatpush.msra.mxu0 %v131
      %455 = vmatpush.msra.mxu0 %v128
      %456 = vmatmul.f32.gmra.mxu0 %v323
      %v457 = vpop.f32.mrf.mxu0
      %v458 = vadd.f32 0.0, %v457
      %459 = vdwg.mxu0
      %460 = vmatpush.msra.mxu0 %v221
      %461 = vmatpush.msra.mxu0 %v218
      %462 = vmatpush.msra.mxu0 %v215
      %463 = vmatpush.msra.mxu0 %v212
      %464 = vmatpush.msra.mxu0 %v209
      %465 = vmatpush.msra.mxu0 %v206
      %466 = vmatpush.msra.mxu0 %v203
      %467 = vmatpush.msra.mxu0 %v200
      %468 = vmatpush.msra.mxu0 %v197
      %469 = vmatpush.msra.mxu0 %v194
      %470 = vmatpush.msra.mxu0 %v191
      %471 = vmatpush.msra.mxu0 %v188
      %472 = vmatpush.msra.mxu0 %v185
      %473 = vmatpush.msra.mxu0 %v182
      %474 = vmatpush.msra.mxu0 %v179
      %475 = vmatpush.msra.mxu0 %v176
      %476 = vmatmul.f32.gmra.mxu0 %v326
      %v477 = vpop.f32.mrf.mxu0
      %v478 = vadd.f32 %v458, %v477
      %479 = vdwg.mxu0
      %480 = vmatpush.msra.mxu0 %v174
      %481 = vmatpush.msra.mxu0 %v171
      %482 = vmatpush.msra.mxu0 %v168
      %483 = vmatpush.msra.mxu0 %v165
      %484 = vmatpush.msra.mxu0 %v162
      %485 = vmatpush.msra.mxu0 %v159
      %486 = vmatpush.msra.mxu0 %v156
      %487 = vmatpush.msra.mxu0 %v153
      %488 = vmatpush.msra.mxu0 %v150
      %489 = vmatpush.msra.mxu0 %v147
      %490 = vmatpush.msra.mxu0 %v144
      %491 = vmatpush.msra.mxu0 %v141
      %492 = vmatpush.msra.mxu0 %v138
      %493 = vmatpush.msra.mxu0 %v135
      %494 = vmatpush.msra.mxu0 %v132
      %495 = vmatpush.msra.mxu0 %v129
      %496 = vmatmul.f32.gmra.mxu0 %v323
      %v497 = vpop.f32.mrf.mxu0
      %v498 = vadd.f32 0.0, %v497
      %499 = vdwg.mxu0
      %500 = vmatpush.msra.mxu0 %v222
      %501 = vmatpush.msra.mxu0 %v219
      %502 = vmatpush.msra.mxu0 %v216
      %503 = vmatpush.msra.mxu0 %v213
      %504 = vmatpush.msra.mxu0 %v210
      %505 = vmatpush.msra.mxu0 %v207
      %506 = vmatpush.msra.mxu0 %v204
      %507 = vmatpush.msra.mxu0 %v201
      %508 = vmatpush.msra.mxu0 %v198
      %509 = vmatpush.msra.mxu0 %v195
      %510 = vmatpush.msra.mxu0 %v192
      %511 = vmatpush.msra.mxu0 %v189
      %512 = vmatpush.msra.mxu0 %v186
      %513 = vmatpush.msra.mxu0 %v183
      %514 = vmatpush.msra.mxu0 %v180
      %515 = vmatpush.msra.mxu0 %v177
      %516 = vmatmul.f32.gmra.mxu0 %v326
      %v517 = vpop.f32.mrf.mxu0
      %v518 = vadd.f32 %v498, %v517
      %519 = vdwg.mxu0
      %s520 = sld [smem:[#allocation5 + %s226]]
      %p521 = scmp.gt.s32.totalorder %s520, 0
      %s522 = scalar_select %p521, 1, 0
      %v523 = vstv %s522
      %vm524 = vcmp.eq.s32.totalorder %v523, 1
      %v526 = vrot.slane %v233, 7
      %v528 = vsel %vm524, %v399, %v526
      %v530 = vrot.slane %v438, 5
      %v532 = vadd.f32 %v233, %v530
      %v533 = vxor.u32 %v532, 2147483648
      %v534 = vmul.f32 %v533, 1.442695
      %v535 = vpow.pop %v534
      %v536 = vadd.f32 %v535, 1.0
      %v537 = vrcp.pop %v536
      %v538 = vmul.f32 %v536, %v537
      %v539 = vsub.f32 1.0, %v538
      %v540 = vmul.f32 %v537, %v539
      %v541 = vadd.f32 %v537, %v540
      %vm542 = vweird.f32 %v536
      %vm543 = vweird.f32 %v537
      %vm544 = vmor %vm542, %vm543
      %v545 = vsel %vm544, %v537, %v541
      %v546 = vand.u32 2147483647, %v536
      %vm547 = vcmp.eq.f32.partialorder %v546, 8.507059e+37
      %v548 = vand.u32 %v536, 2147483648
      %v549 = vor.u32 1.1754944e-38, %v548
      %v550 = vsel %vm547, %v549, %v545
      %v551 = vmul.f32 1.0, %v550
      %v553 = vrot.slane %v478, 4
      %v555 = vadd.f32 %v233, %v553
      %v556 = vxor.u32 %v555, 2147483648
      %v557 = vmul.f32 %v556, 1.442695
      %v558 = vpow.pop %v557
      %v559 = vadd.f32 %v558, 1.0
      %v560 = vrcp.pop %v559
      %v561 = vmul.f32 %v559, %v560
      %v562 = vsub.f32 1.0, %v561
      %v563 = vmul.f32 %v560, %v562
      %v564 = vadd.f32 %v560, %v563
      %vm565 = vweird.f32 %v559
      %vm566 = vweird.f32 %v560
      %vm567 = vmor %vm565, %vm566
      %v568 = vsel %vm567, %v560, %v564
      %v569 = vand.u32 2147483647, %v559
      %vm570 = vcmp.eq.f32.partialorder %v569, 8.507059e+37
      %v571 = vand.u32 %v559, 2147483648
      %v572 = vor.u32 1.1754944e-38, %v571
      %v573 = vsel %vm570, %v572, %v568
      %v574 = vmul.f32 1.0, %v573
      %v576 = vrot.slane %v518, 3
      %v578 = vadd.f32 %v233, %v576
      %v579 = vtanh.pop %v578
      %v581 = vrot.slane %v579, 2
      %v583 = vmul.f32 %v551, %v581
      %v585 = vrot.slane %v528, 7
      %v587 = vadd.f32 %v583, %v585
      %v588 = vtanh.pop %v587
      %v590 = vrot.slane %v588, 7
      %v592 = vmul.f32 %v574, %v590
      %vm593 = vcmp.eq.s32.totalorder %v224, 0
      %vm594 = vcmp.eq.s32.totalorder %v224, 1
      %v595 = vperm.slane %v587, 3
      %v596 = vsel %vm594, %v595, %v233
      %v597 = vperm.slane %v592, 4
      %v598 = vsel %vm593, %v597, %v596
      %599 = vst [vmem:[%s232] sm:$0xff] %v598
    $region57: #{single_round_graph_lstm.1} parent=1 // loop_footer
      %s230 = sadd.s32 1, %s226
    $region58: #{single_round_graph_lstm.1} parent=1 // loop_footer_branch
      %225 = sbr.rel target = $region54
    $region59: #{single_round_graph_lstm.1} parent=1 // loop_exit
      _
    // Predicated region
    $region60: #{single_round_graph_lstm.1} parent=1 // pred_check
      _
    $region61: #{single_round_graph_lstm.1} parent=1 // pred_check_branch
      %601 = sbr.rel (0) target = $region63
    $region62: #{single_round_graph_lstm.1} parent=1 // pred_region
      _
    $region63: #{single_round_graph_lstm.1} parent=1 // pred_fallthru
      _
    // Predicated region
    $region64: #{single_round_graph_lstm.1} parent=1 // pred_check
      _
    $region65: #{single_round_graph_lstm.1} parent=1 // pred_check_branch
      %603 = sbr.rel (0) target = $region67
    $region66: #{single_round_graph_lstm.1} parent=1 // pred_region
      _
    $region67: #{single_round_graph_lstm.1} parent=1 // pred_fallthru
      _
    %604 = vsyncpa [#allocation4], 1
    %605 = vsyncpa [#allocation6], 1
  %606 = vsyncmov [#allocation2]
  %s607 = vpop.sfrf %606
  %p608 = scmp.eq.s32.totalorder %s607, 0
  %p609 = pneg %p608
  %611 = shalt.err (%p609)

</llo_original>
